<compile_context>
chip_gen: v7x
topology: tpu7x:2x2x1
jax: 0.10.0
libtpu: 0.0.40
codegen_flags: <defaults>
</compile_context>

<pallas_src>
import jax
import jax.numpy as jnp
from jax import lax
from jax.experimental import pallas as pl
from jax.experimental.pallas import tpu as pltpu

LENGTH = 1000          # forward() passes length=1000
DT = 0.01              # Euler integration step
SQRT_DT = DT ** 0.5

CHUNK = 128            # time steps per chunk (lane dimension)
NCHUNK = 8             # number of chunks (sublane dimension); 8*128 = 1024 >= 1000
PAD = NCHUNK * CHUNK   # padded length
SDIM = 128             # state dim (4) padded to 128 lanes so every matmul is MXU-native


# ----------------------------------------------------------------------------
# Pallas kernel: chunked LTI simulation, log-depth chunk scan, f32 in VMEM.
# ----------------------------------------------------------------------------
def bold_lti_kernel(eps_ref, htvp_ref, gt_ref, ptpow_ref, y0_ref, y_ref):
    eps = eps_ref[...]                                                    # (8, 128)

    # One 256-wide MXU matmul: within-chunk impulse response AND chunk-boundary
    # noise-state increments in a single pass.
    conv = jnp.dot(eps, htvp_ref[...], preferred_element_type=jnp.float32)  # (8, 256)
    y_conv = conv[:, :CHUNK]                                              # (8, 128)
    dz = conv[:, CHUNK:]                                                  # (8, 128)

    # Hillis-Steele (log-depth) scan over the 8 chunk boundaries:
    #   S[c] = sum_{i<=c} dz[i] @ PT^(c-i)
    # Three doubling steps; each is one full (8,128)@(128,128) MXU matmul, the
    # sublane roll goes to the XLU slot and the masking to the VPU slot.
    row = lax.broadcasted_iota(jnp.int32, (NCHUNK, SDIM), 0)              # sublane index
    s = dz
    for d_idx, d in enumerate((1, 2, 4)):
        shifted = pltpu.roll(s, shift=d, axis=0)                          # row c <- row c-d
        shifted = jnp.where(row >= d, shifted, 0.0)                       # kill wrapped rows
        s = s + jnp.dot(shifted, ptpow_ref[d_idx],                        # PT^(2^d_idx chunks)
                        preferred_element_type=jnp.float32)

    # Exclusive shift: noise part of the chunk-entry state z_c (z_0^noise = 0).
    z_noise = jnp.where(row >= 1, pltpu.roll(s, shift=1, axis=0), 0.0)    # (8, 128)

    # One batched matmul for all chunk-entry-state responses, one dense store.
    y_det = jnp.dot(z_noise, gt_ref[...], preferred_element_type=jnp.float32)  # (8, 128)
    y_ref[...] = y_conv + y_det + y0_ref[...]


# ----------------------------------------------------------------------------
# Wrapper-side precompute of the param-only LTI operators (pure JAX, tiny,
# log-depth: no long serial scan on device).
# ----------------------------------------------------------------------------
def _build_lti_operators(params):
    p = params.astype(jnp.float32)
    sigma, mu, lamb, beta, psi, phi, chi, nflag = [p[i] for i in range(8)]

    # Loop-invariant constants folded once.
    a_x = 1.0 - sigma * DT
    b_x = DT * mu
    c_x = lamb * SQRT_DT * nflag
    a_s = 1.0 - phi * DT

    zero = jnp.zeros((), jnp.float32)
    one = jnp.ones((), jnp.float32)

    # Augmented state z = [x, s, f, u] with u == 1 (affine terms via homogeneous coord).
    row_x = jnp.stack([a_x, zero, zero, b_x])
    row_s = jnp.stack([DT * psi * a_x, a_s, -DT * chi, DT * psi * b_x + DT * chi])
    row_f = jnp.stack([zero, zero, one, zero]) + DT * row_s
    row_u = jnp.stack([zero, zero, zero, one])
    M = jnp.stack([row_x, row_s, row_f, row_u])                         # (4,4) one-step transition
    w = jnp.stack([c_x, DT * psi * c_x, DT * DT * psi * c_x, zero])     # noise input direction
    C = jnp.stack([zero, zero, -beta, beta])                            # y_t = C @ z_{t+1}
    z0 = jnp.stack([zero, zero, one, one])                              # x=0, s=0, f=1, u=1

    hi = lax.Precision.HIGHEST

    # 7-step doubling: pows[k] = M^k for k = 0..127 (replaces the 128-long scan).
    pows = jnp.eye(4, dtype=jnp.float32)[None]                          # [M^0]
    Mk = M
    for _ in range(7):
        pows = jnp.concatenate(
            [pows, jnp.einsum('kij,jl->kil', pows, Mk, precision=hi)], axis=0)
        Mk = jnp.dot(Mk, Mk, precision=hi)
    P128 = Mk                                                           # M^128
    P256 = jnp.dot(P128, P128, precision=hi)                            # M^256
    P512 = jnp.dot(P256, P256, precision=hi)                            # M^512

    rs = jnp.einsum('j,kjl->kl', C, pows, precision=hi)                 # rs[k] = C M^k      (128,4)
    qs = jnp.einsum('kjl,l->kj', pows, w, precision=hi)                 # qs[k] = M^k w      (128,4)
    h = jnp.einsum('kl,l->k', rs, w, precision=hi)                      # h[k]  = C M^k w    (128,)
    G = jnp.concatenate([rs[1:], jnp.dot(C, P128, precision=hi)[None]], axis=0)  # G[j]=C M^{j+1}
    V = qs[::-1]                                                        # V[i] = M^{127-i} w

    # Upper-triangular Toeplitz HT[i, j] = h[j - i] (j >= i) so y_conv = EPS @ HT.
    t = jnp.arange(CHUNK)
    lag = t[None, :] - t[:, None]
    HT = jnp.where(lag >= 0, h[jnp.clip(lag, 0, CHUNK - 1)], 0.0).astype(jnp.float32)

    # Deterministic (param-only) response, entirely outside the kernel:
    #   Y0[c, j] = C M^{j+1} (P128^c z0) = G[j] . zdet_c
    zdet = [z0]
    for _ in range(NCHUNK - 1):
        zdet.append(jnp.dot(P128, zdet[-1], precision=hi))
    Zdet = jnp.stack(zdet)                                              # (8,4)
    Y0 = jnp.dot(Zdet, G.T, precision=hi).astype(jnp.float32)           # (8,128)

    # Pad the 4-dim state to 128 lanes and fuse [HT | VP] into one 256-wide operand.
    VP = jnp.zeros((CHUNK, SDIM), jnp.float32).at[:, :4].set(V)         # (128,128)
    HTVP = jnp.concatenate([HT, VP], axis=1)                            # (128,256)
    GT = jnp.zeros((SDIM, CHUNK), jnp.float32).at[:4, :].set(G.T)       # (128,128)
    PTPOW = jnp.zeros((3, SDIM, SDIM), jnp.float32)
    PTPOW = PTPOW.at[0, :4, :4].set(P128.T)                             # PT^1 (in chunk units)
    PTPOW = PTPOW.at[1, :4, :4].set(P256.T)                             # PT^2
    PTPOW = PTPOW.at[2, :4, :4].set(P512.T)                             # PT^4
    return HTVP, GT, PTPOW, Y0


def time_domain_model_forward(params, noise):
    """Forward pass of TimeDomainModel: returns the (1000,) BOLD time series."""
    HTVP, GT, PTPOW, Y0 = _build_lti_operators(params)
    eps = jnp.zeros((PAD,), jnp.float32).at[:LENGTH].set(noise.astype(jnp.float32))
    eps = eps.reshape(NCHUNK, CHUNK)                                    # lane-dense (8,128)

    # Whole-array VMEM BlockSpecs (total ~0.4 MiB); latency-bound, no grid needed.
    y = pl.pallas_call(
        bold_lti_kernel,
        out_shape=jax.ShapeDtypeStruct((NCHUNK, CHUNK), jnp.float32),
        in_specs=[pl.BlockSpec(memory_space=pltpu.VMEM)] * 5,
        out_specs=pl.BlockSpec(memory_space=pltpu.VMEM),
    )(eps, HTVP, GT, PTPOW, Y0)

    return y.reshape(-1)[:LENGTH]


# ----------------------------------------------------------------------------
# Serial Euler-Maruyama reference (the original semantics), used as the oracle.
# ----------------------------------------------------------------------------
def euler_bold_reference(params, noise):
    p = params.astype(jnp.float32)
    sigma, mu, lamb, beta, psi, phi, chi, nflag = [p[i] for i in range(8)]

    def step(carry, eps):
        x, s, f = carry
        x = x + DT * (mu - sigma * x) + lamb * SQRT_DT * (eps * nflag)
        s = s + DT * (psi * x - phi * s - chi * (f - 1.0))
        f = f + DT * s
        y = beta * (1.0 - f)
        return (x, s, f), y

    init = (jnp.float32(0.0), jnp.float32(0.0), jnp.float32(1.0))
    _, ys = lax.scan(step, init, noise.astype(jnp.float32))
    return ys


if __name__ == "__main__":
    # Deterministic parameter initialization, matching TimeDomainModel.__init__:
    sigma, mu, lamb, beta, psi, phi, chi = 0.9, 0.8, 0.3, 0.9, 0.5, 2.0, 0.3
    noise_flag = 1.0  # forward() passes noise=True
    params = jnp.array(
        [sigma, mu, lamb, beta, psi, phi, chi, noise_flag], dtype=jnp.float32
    )

    # Deterministic noise increments (drawn host-side, consumed in-kernel).
    noise = jax.random.normal(jax.random.PRNGKey(0), (LENGTH,), dtype=jnp.float32)

    fwd = jax.jit(time_domain_model_forward)
    yhat = jax.block_until_ready(fwd(params, noise))

    assert yhat.shape == (LENGTH,), yhat.shape
    assert yhat.dtype == jnp.float32, yhat.dtype
    assert bool(jnp.all(jnp.isfinite(yhat)))

    # Check the chunked-LTI / MXU reformulation against the serial Euler
    # recurrence (observed max |diff| ~1e-5 in f32; tolerance tightened per review).
    yref = jax.block_until_ready(jax.jit(euler_bold_reference)(params, noise))
    max_err = float(jnp.max(jnp.abs(yhat - yref)))
    assert max_err < 2e-3, f"chunked LTI kernel deviates from serial Euler: {max_err}"

    print("KERNEL_OK")
</pallas_src>

<mosaic_0001>
module attributes {stable_mosaic.version = 11 : i64} {
  func.func @bold_lti_kernel(%arg0: memref<8x128xf32, #tpu.memory_space<vmem>>, %arg1: memref<128x256xf32, #tpu.memory_space<vmem>>, %arg2: memref<128x128xf32, #tpu.memory_space<vmem>>, %arg3: memref<3x128x128xf32, #tpu.memory_space<vmem>>, %arg4: memref<8x128xf32, #tpu.memory_space<vmem>>, %arg5: memref<8x128xf32, #tpu.memory_space<vmem>>) attributes {dimension_semantics = [], scalar_prefetch = 0 : i64, scratch_operands = 0 : i64, tpu.core_type = #tpu.core_type<tc>} {
    %c0 = arith.constant 0 : index
    %c0_0 = arith.constant 0 : index
    %0 = vector.load %arg0[%c0, %c0_0] : memref<8x128xf32, #tpu.memory_space<vmem>>, vector<8x128xf32>
    %c0_1 = arith.constant 0 : index
    %c0_2 = arith.constant 0 : index
    %1 = vector.load %arg1[%c0_1, %c0_2] : memref<128x256xf32, #tpu.memory_space<vmem>>, vector<128x256xf32>
    %cst = arith.constant dense<0.000000e+00> : vector<8x256xf32>
    %2 = tpu.matmul %0, %1, %cst {dimension_numbers = #tpu.dot_dimension_numbers<[1], [0], [0], [1], [0, 0, 1, 1], [], []>} : vector<8x128xf32>, vector<128x256xf32>, vector<8x256xf32> -> vector<8x256xf32>
    %3 = vector.extract_strided_slice %2 {offsets = [0, 0], sizes = [8, 128], strides = [1, 1]} : vector<8x256xf32> to vector<8x128xf32>
    %4 = vector.extract_strided_slice %2 {offsets = [0, 128], sizes = [8, 128], strides = [1, 1]} : vector<8x256xf32> to vector<8x128xf32>
    %5 = tpu.iota {dimensions = array<i32: 0>} : vector<8x128xi32>
    %c1_i32 = arith.constant 1 : i32
    %6 = tpu.dynamic_rotate %4 by %c1_i32 dim 0 : vector<8x128xf32>, i32 -> vector<8x128xf32>
    %c1_i32_3 = arith.constant 1 : i32
    %7 = vector.broadcast %c1_i32_3 : i32 to vector<8x128xi32>
    %8 = arith.cmpi sge, %5, %7 : vector<8x128xi32>
    %cst_4 = arith.constant 0.000000e+00 : f32
    %9 = vector.broadcast %cst_4 : f32 to vector<8x128xf32>
    %10 = arith.select %8, %6, %9 : vector<8x128xi1>, vector<8x128xf32>
    %c0_5 = arith.constant 0 : index
    %c0_6 = arith.constant 0 : index
    %c0_7 = arith.constant 0 : index
    %11 = vector.load %arg3[%c0_5, %c0_6, %c0_7] : memref<3x128x128xf32, #tpu.memory_space<vmem>>, vector<1x128x128xf32>
    %12 = vector.shape_cast %11 : vector<1x128x128xf32> to vector<128x128xf32>
    %cst_8 = arith.constant dense<0.000000e+00> : vector<8x128xf32>
    %13 = tpu.matmul %10, %12, %cst_8 {dimension_numbers = #tpu.dot_dimension_numbers<[1], [0], [0], [1], [0, 0, 1, 1], [], []>} : vector<8x128xf32>, vector<128x128xf32>, vector<8x128xf32> -> vector<8x128xf32>
    %14 = arith.addf %4, %13 : vector<8x128xf32>
    %c2_i32 = arith.constant 2 : i32
    %15 = tpu.dynamic_rotate %14 by %c2_i32 dim 0 : vector<8x128xf32>, i32 -> vector<8x128xf32>
    %c2_i32_9 = arith.constant 2 : i32
    %16 = vector.broadcast %c2_i32_9 : i32 to vector<8x128xi32>
    %17 = arith.cmpi sge, %5, %16 : vector<8x128xi32>
    %cst_10 = arith.constant 0.000000e+00 : f32
    %18 = vector.broadcast %cst_10 : f32 to vector<8x128xf32>
    %19 = arith.select %17, %15, %18 : vector<8x128xi1>, vector<8x128xf32>
    %c1 = arith.constant 1 : index
    %c0_11 = arith.constant 0 : index
    %c0_12 = arith.constant 0 : index
    %20 = vector.load %arg3[%c1, %c0_11, %c0_12] : memref<3x128x128xf32, #tpu.memory_space<vmem>>, vector<1x128x128xf32>
    %21 = vector.shape_cast %20 : vector<1x128x128xf32> to vector<128x128xf32>
    %cst_13 = arith.constant dense<0.000000e+00> : vector<8x128xf32>
    %22 = tpu.matmul %19, %21, %cst_13 {dimension_numbers = #tpu.dot_dimension_numbers<[1], [0], [0], [1], [0, 0, 1, 1], [], []>} : vector<8x128xf32>, vector<128x128xf32>, vector<8x128xf32> -> vector<8x128xf32>
    %23 = arith.addf %14, %22 : vector<8x128xf32>
    %c4_i32 = arith.constant 4 : i32
    %24 = tpu.dynamic_rotate %23 by %c4_i32 dim 0 : vector<8x128xf32>, i32 -> vector<8x128xf32>
    %c4_i32_14 = arith.constant 4 : i32
    %25 = vector.broadcast %c4_i32_14 : i32 to vector<8x128xi32>
    %26 = arith.cmpi sge, %5, %25 : vector<8x128xi32>
    %cst_15 = arith.constant 0.000000e+00 : f32
    %27 = vector.broadcast %cst_15 : f32 to vector<8x128xf32>
    %28 = arith.select %26, %24, %27 : vector<8x128xi1>, vector<8x128xf32>
    %c2 = arith.constant 2 : index
    %c0_16 = arith.constant 0 : index
    %c0_17 = arith.constant 0 : index
    %29 = vector.load %arg3[%c2, %c0_16, %c0_17] : memref<3x128x128xf32, #tpu.memory_space<vmem>>, vector<1x128x128xf32>
    %30 = vector.shape_cast %29 : vector<1x128x128xf32> to vector<128x128xf32>
    %cst_18 = arith.constant dense<0.000000e+00> : vector<8x128xf32>
    %31 = tpu.matmul %28, %30, %cst_18 {dimension_numbers = #tpu.dot_dimension_numbers<[1], [0], [0], [1], [0, 0, 1, 1], [], []>} : vector<8x128xf32>, vector<128x128xf32>, vector<8x128xf32> -> vector<8x128xf32>
    %32 = arith.addf %23, %31 : vector<8x128xf32>
    %c1_i32_19 = arith.constant 1 : i32
    %33 = vector.broadcast %c1_i32_19 : i32 to vector<8x128xi32>
    %34 = arith.cmpi sge, %5, %33 : vector<8x128xi32>
    %c1_i32_20 = arith.constant 1 : i32
    %35 = tpu.dynamic_rotate %32 by %c1_i32_20 dim 0 : vector<8x128xf32>, i32 -> vector<8x128xf32>
    %cst_21 = arith.constant 0.000000e+00 : f32
    %36 = vector.broadcast %cst_21 : f32 to vector<8x128xf32>
    %37 = arith.select %34, %35, %36 : vector<8x128xi1>, vector<8x128xf32>
    %c0_22 = arith.constant 0 : index
    %c0_23 = arith.constant 0 : index
    %38 = vector.load %arg2[%c0_22, %c0_23] : memref<128x128xf32, #tpu.memory_space<vmem>>, vector<128x128xf32>
    %cst_24 = arith.constant dense<0.000000e+00> : vector<8x128xf32>
    %39 = tpu.matmul %37, %38, %cst_24 {dimension_numbers = #tpu.dot_dimension_numbers<[1], [0], [0], [1], [0, 0, 1, 1], [], []>} : vector<8x128xf32>, vector<128x128xf32>, vector<8x128xf32> -> vector<8x128xf32>
    %40 = arith.addf %3, %39 : vector<8x128xf32>
    %c0_25 = arith.constant 0 : index
    %c0_26 = arith.constant 0 : index
    %41 = vector.load %arg4[%c0_25, %c0_26] : memref<8x128xf32, #tpu.memory_space<vmem>>, vector<8x128xf32>
    %42 = arith.addf %40, %41 : vector<8x128xf32>
    %c0_27 = arith.constant 0 : index
    %c0_28 = arith.constant 0 : index
    %43 = vector.load %arg5[%c0_27, %c0_28] : memref<8x128xf32, #tpu.memory_space<vmem>>, vector<8x128xf32>
    tpu.vector_store %arg5[%c0_27, %c0_28], %42 {strides = array<i32>} : memref<8x128xf32, #tpu.memory_space<vmem>>, vector<8x128xf32>,
    return
  }
}

</mosaic_0001>

<llo_original>
// kernel: time_domain_model_forward.1
$region0: #{time_domain_model_forward.1}
  #allocation0 [shape = 'u32[]', space=smem, size = 0x4, offset = 0x4, fixed_abs, tag = 'smem constant byte address 0x4 - core index']
  #allocation1 [shape = 'u32[144,128]{1,0:T(1,128)}', space=vmem, size = 0x12000, scoped, tag = 'internal scratch']
  %s0 = inlined_call_operand.vmem [shape: f32[8,128], index: 0, kind: input, shape index: {}]
  %s1 = inlined_call_operand.vmem [shape: f32[128,256], index: 1, kind: input, shape index: {}]
  %s2 = inlined_call_operand.vmem [shape: f32[128,128], index: 2, kind: input, shape index: {}]
  %s3 = inlined_call_operand.vmem [shape: f32[3,128,128], index: 3, kind: input, shape index: {}]
  %s4 = inlined_call_operand.vmem [shape: f32[8,128], index: 4, kind: input, shape index: {}]
  %s5 = inlined_call_operand.hbm [shape: f32[8,128], index: 5, kind: output, shape index: {}]
  %s6 = sld [smem:[#allocation0]]
  $region30: #{time_domain_model_forward.1} parent=0
    _
  %s8 = ssub.s32 1, %s6
  %s9 = scalar_select 0, %s8, %s6
  $region1: #{time_domain_model_forward.1} parent=0
    #allocation2 [shape = 'u8[4096]{0}', space=vmem, size = 0x1000, scoped, tag = 'output window, operand 0, single buffered']
    #allocation3 [shape = 's32[1]{0}', space=sflag, size = 0x4, scoped, tag = 'scoped memory for time_domain_model_forward.1']
    %10 = vsyncpa [#allocation3], 0
    // Predicated region
    $region2: #{time_domain_model_forward.1} parent=1 // pred_check
      _
    $region3: #{time_domain_model_forward.1} parent=1 // pred_check_branch
      %12 = sbr.rel (0) target = $region5
    $region4: #{time_domain_model_forward.1} parent=1 // pred_region
      _
    $region5: #{time_domain_model_forward.1} parent=1 // pred_fallthru
      _
    // Predicated region
    $region6: #{time_domain_model_forward.1} parent=1 // pred_check
      _
    $region7: #{time_domain_model_forward.1} parent=1 // pred_check_branch
      %14 = sbr.rel (0) target = $region9
    $region8: #{time_domain_model_forward.1} parent=1 // pred_region
      _
    $region9: #{time_domain_model_forward.1} parent=1 // pred_fallthru
      _
    // Predicated region
    $region10: #{time_domain_model_forward.1} parent=1 // pred_check
      _
    $region11: #{time_domain_model_forward.1} parent=1 // pred_check_branch
      %16 = sbr.rel (0) target = $region13
    $region12: #{time_domain_model_forward.1} parent=1 // pred_region
      _
    $region13: #{time_domain_model_forward.1} parent=1 // pred_fallthru
      _
    // Predicated region
    $region14: #{time_domain_model_forward.1} parent=1 // pred_check
      _
    $region15: #{time_domain_model_forward.1} parent=1 // pred_check_branch
      %18 = sbr.rel (0) target = $region17
    $region16: #{time_domain_model_forward.1} parent=1 // pred_region
      _
    $region17: #{time_domain_model_forward.1} parent=1 // pred_fallthru
      _
    // Predicated region
    $region18: #{time_domain_model_forward.1} parent=1 // pred_check
      _
    $region19: #{time_domain_model_forward.1} parent=1 // pred_check_branch
      %20 = sbr.rel (0) target = $region21
    $region20: #{time_domain_model_forward.1} parent=1 // pred_region
      _
    $region21: #{time_domain_model_forward.1} parent=1 // pred_fallthru
      _
    %v21 = vld [vmem:[%s0] sm:$0xff]
    %v22 = vld [vmem:[%s1] sm:$0xff]
    %v23 = vld [vmem:[%s1 + $0x8] sm:$0xff]
    %v24 = vld [vmem:[%s1 + $0x10] sm:$0xff]
    %v25 = vld [vmem:[%s1 + $0x18] sm:$0xff]
    %v26 = vld [vmem:[%s1 + $0x20] sm:$0xff]
    %v27 = vld [vmem:[%s1 + $0x28] sm:$0xff]
    %v28 = vld [vmem:[%s1 + $0x30] sm:$0xff]
    %v29 = vld [vmem:[%s1 + $0x38] sm:$0xff]
    %v30 = vld [vmem:[%s1 + $0x40] sm:$0xff]
    %v31 = vld [vmem:[%s1 + $0x48] sm:$0xff]
    %v32 = vld [vmem:[%s1 + $0x50] sm:$0xff]
    %v33 = vld [vmem:[%s1 + $0x58] sm:$0xff]
    %v34 = vld [vmem:[%s1 + $0x60] sm:$0xff]
    %v35 = vld [vmem:[%s1 + $0x68] sm:$0xff]
    %v36 = vld [vmem:[%s1 + $0x70] sm:$0xff]
    %v37 = vld [vmem:[%s1 + $0x78] sm:$0xff]
    %v38 = vld [vmem:[%s1 + $0x80] sm:$0xff]
    %v39 = vld [vmem:[%s1 + $0x88] sm:$0xff]
    %v40 = vld [vmem:[%s1 + $0x90] sm:$0xff]
    %v41 = vld [vmem:[%s1 + $0x98] sm:$0xff]
    %v42 = vld [vmem:[%s1 + $0xa0] sm:$0xff]
    %v43 = vld [vmem:[%s1 + $0xa8] sm:$0xff]
    %v44 = vld [vmem:[%s1 + $0xb0] sm:$0xff]
    %v45 = vld [vmem:[%s1 + $0xb8] sm:$0xff]
    %v46 = vld [vmem:[%s1 + $0xc0] sm:$0xff]
    %v47 = vld [vmem:[%s1 + $0xc8] sm:$0xff]
    %v48 = vld [vmem:[%s1 + $0xd0] sm:$0xff]
    %v49 = vld [vmem:[%s1 + $0xd8] sm:$0xff]
    %v50 = vld [vmem:[%s1 + $0xe0] sm:$0xff]
    %v51 = vld [vmem:[%s1 + $0xe8] sm:$0xff]
    %v52 = vld [vmem:[%s1 + $0xf0] sm:$0xff]
    %v53 = vld [vmem:[%s1 + $0xf8] sm:$0xff]
    %54 = vmatprep.subr.mxu0 %v23
    %55 = vmatpush1.msra.mxu0 %v22
    %56 = vmatprep.subr.mxu0 %v25
    %57 = vmatpush1.msra.mxu0 %v24
    %58 = vmatprep.subr.mxu0 %v27
    %59 = vmatpush1.msra.mxu0 %v26
    %60 = vmatprep.subr.mxu0 %v29
    %61 = vmatpush1.msra.mxu0 %v28
    %62 = vmatprep.subr.mxu0 %v31
    %63 = vmatpush1.msra.mxu0 %v30
    %64 = vmatprep.subr.mxu0 %v33
    %65 = vmatpush1.msra.mxu0 %v32
    %66 = vmatprep.subr.mxu0 %v35
    %67 = vmatpush1.msra.mxu0 %v34
    %68 = vmatprep.subr.mxu0 %v37
    %69 = vmatpush1.msra.mxu0 %v36
    %70 = vmatprep.subr.mxu0 %v39
    %71 = vmatpush1.msra.mxu0 %v38
    %72 = vmatprep.subr.mxu0 %v41
    %73 = vmatpush1.msra.mxu0 %v40
    %74 = vmatprep.subr.mxu0 %v43
    %75 = vmatpush1.msra.mxu0 %v42
    %76 = vmatprep.subr.mxu0 %v45
    %77 = vmatpush1.msra.mxu0 %v44
    %78 = vmatprep.subr.mxu0 %v47
    %79 = vmatpush1.msra.mxu0 %v46
    %80 = vmatprep.subr.mxu0 %v49
    %81 = vmatpush1.msra.mxu0 %v48
    %82 = vmatprep.subr.mxu0 %v51
    %83 = vmatpush1.msra.mxu0 %v50
    %84 = vmatprep.subr.mxu0 %v53
    %85 = vmatpush1.msra.mxu0 %v52
    %86 = vmatprep.subr.mxu0 0.0
    %87 = vmatpush1.msra.mxu0 0.0
    %88 = vmatprep.subr.mxu0 0.0
    %89 = vmatpush1.msra.mxu0 0.0
    %90 = vmatprep.subr.mxu0 0.0
    %91 = vmatpush1.msra.mxu0 0.0
    %92 = vmatprep.subr.mxu0 0.0
    %93 = vmatpush1.msra.mxu0 0.0
    %94 = vmatprep.subr.mxu0 0.0
    %95 = vmatpush1.msra.mxu0 0.0
    %96 = vmatprep.subr.mxu0 0.0
    %97 = vmatpush1.msra.mxu0 0.0
    %98 = vmatprep.subr.mxu0 0.0
    %99 = vmatpush1.msra.mxu0 0.0
    %100 = vmatprep.subr.mxu0 0.0
    %101 = vmatpush1.msra.mxu0 0.0
    %102 = vmatprep.subr.mxu0 0.0
    %103 = vmatpush1.msra.mxu0 0.0
    %104 = vmatprep.subr.mxu0 0.0
    %105 = vmatpush1.msra.mxu0 0.0
    %106 = vmatprep.subr.mxu0 0.0
    %107 = vmatpush1.msra.mxu0 0.0
    %108 = vmatprep.subr.mxu0 0.0
    %109 = vmatpush1.msra.mxu0 0.0
    %110 = vmatprep.subr.mxu0 0.0
    %111 = vmatpush1.msra.mxu0 0.0
    %112 = vmatprep.subr.mxu0 0.0
    %113 = vmatpush1.msra.mxu0 0.0
    %114 = vmatprep.subr.mxu0 0.0
    %115 = vmatpush1.msra.mxu0 0.0
    %116 = vmatprep.subr.mxu0 0.0
    %117 = vmatpush1.msra.mxu0 0.0
    %118 = vmatprep.mubr.f32.mxu0 0.0
    %119 = vmatmul.mubr.f32.gmra.mrb[0].mxu0 %v21
    %v120 = vpop.f32.mrb[0].mxu0
    %v121 = vadd.f32 0.0, %v120
    %v122 = vpop.f32.mrb[0].mxu0
    %v123 = vadd.f32 0.0, %v122
    %124 = vdwg.mxu0
    %v125 = vlaneseq
    %v126 = vshrl.u32 %v125, 7
    %v127 = vrot.slane %v123, 7
    %vm128 = vcmp.ge.s32.totalorder %v126, 1
    %v129 = vsel %vm128, %v127, 0.0
    %v130 = vld [vmem:[%s3] sm:$0xff]
    %v131 = vld [vmem:[%s3 + $0x8] sm:$0xff]
    %v132 = vld [vmem:[%s3 + $0x10] sm:$0xff]
    %v133 = vld [vmem:[%s3 + $0x18] sm:$0xff]
    %v134 = vld [vmem:[%s3 + $0x20] sm:$0xff]
    %v135 = vld [vmem:[%s3 + $0x28] sm:$0xff]
    %v136 = vld [vmem:[%s3 + $0x30] sm:$0xff]
    %v137 = vld [vmem:[%s3 + $0x38] sm:$0xff]
    %v138 = vld [vmem:[%s3 + $0x40] sm:$0xff]
    %v139 = vld [vmem:[%s3 + $0x48] sm:$0xff]
    %v140 = vld [vmem:[%s3 + $0x50] sm:$0xff]
    %v141 = vld [vmem:[%s3 + $0x58] sm:$0xff]
    %v142 = vld [vmem:[%s3 + $0x60] sm:$0xff]
    %v143 = vld [vmem:[%s3 + $0x68] sm:$0xff]
    %v144 = vld [vmem:[%s3 + $0x70] sm:$0xff]
    %v145 = vld [vmem:[%s3 + $0x78] sm:$0xff]
    %146 = vmatprep.subr.mxu0 0.0
    %147 = vmatpush1.msra.mxu0 %v130
    %148 = vmatprep.subr.mxu0 0.0
    %149 = vmatpush1.msra.mxu0 %v131
    %150 = vmatprep.subr.mxu0 0.0
    %151 = vmatpush1.msra.mxu0 %v132
    %152 = vmatprep.subr.mxu0 0.0
    %153 = vmatpush1.msra.mxu0 %v133
    %154 = vmatprep.subr.mxu0 0.0
    %155 = vmatpush1.msra.mxu0 %v134
    %156 = vmatprep.subr.mxu0 0.0
    %157 = vmatpush1.msra.mxu0 %v135
    %158 = vmatprep.subr.mxu0 0.0
    %159 = vmatpush1.msra.mxu0 %v136
    %160 = vmatprep.subr.mxu0 0.0
    %161 = vmatpush1.msra.mxu0 %v137
    %162 = vmatprep.subr.mxu0 0.0
    %163 = vmatpush1.msra.mxu0 %v138
    %164 = vmatprep.subr.mxu0 0.0
    %165 = vmatpush1.msra.mxu0 %v139
    %166 = vmatprep.subr.mxu0 0.0
    %167 = vmatpush1.msra.mxu0 %v140
    %168 = vmatprep.subr.mxu0 0.0
    %169 = vmatpush1.msra.mxu0 %v141
    %170 = vmatprep.subr.mxu0 0.0
    %171 = vmatpush1.msra.mxu0 %v142
    %172 = vmatprep.subr.mxu0 0.0
    %173 = vmatpush1.msra.mxu0 %v143
    %174 = vmatprep.subr.mxu0 0.0
    %175 = vmatpush1.msra.mxu0 %v144
    %176 = vmatprep.subr.mxu0 0.0
    %177 = vmatpush1.msra.mxu0 %v145
    %178 = vmatprep.subr.mxu0 0.0
    %179 = vmatpush1.msra.mxu0 0.0
    %180 = vmatprep.subr.mxu0 0.0
    %181 = vmatpush1.msra.mxu0 0.0
    %182 = vmatprep.subr.mxu0 0.0
    %183 = vmatpush1.msra.mxu0 0.0
    %184 = vmatprep.subr.mxu0 0.0
    %185 = vmatpush1.msra.mxu0 0.0
    %186 = vmatprep.subr.mxu0 0.0
    %187 = vmatpush1.msra.mxu0 0.0
    %188 = vmatprep.subr.mxu0 0.0
    %189 = vmatpush1.msra.mxu0 0.0
    %190 = vmatprep.subr.mxu0 0.0
    %191 = vmatpush1.msra.mxu0 0.0
    %192 = vmatprep.subr.mxu0 0.0
    %193 = vmatpush1.msra.mxu0 0.0
    %194 = vmatprep.subr.mxu0 0.0
    %195 = vmatpush1.msra.mxu0 0.0
    %196 = vmatprep.subr.mxu0 0.0
    %197 = vmatpush1.msra.mxu0 0.0
    %198 = vmatprep.subr.mxu0 0.0
    %199 = vmatpush1.msra.mxu0 0.0
    %200 = vmatprep.subr.mxu0 0.0
    %201 = vmatpush1.msra.mxu0 0.0
    %202 = vmatprep.subr.mxu0 0.0
    %203 = vmatpush1.msra.mxu0 0.0
    %204 = vmatprep.subr.mxu0 0.0
    %205 = vmatpush1.msra.mxu0 0.0
    %206 = vmatprep.subr.mxu0 0.0
    %207 = vmatpush1.msra.mxu0 0.0
    %208 = vmatprep.subr.mxu0 0.0
    %209 = vmatpush1.msra.mxu0 0.0
    %210 = vmatprep.mubr.f32.mxu0 0.0
    %211 = vmatmul.mubr.f32.gmra.mrb[0].mxu0 %v129
    %v212 = vpop.f32.mrb[0].mxu0
    %v213 = vadd.f32 0.0, %v212
    %v214 = vpop.f32.mrb[0].mxu0
    %215 = vdwg.mxu0
    %v216 = vadd.f32 %v123, %v213
    %v217 = vrot.slane %v216, 6
    %vm218 = vcmp.ge.s32.totalorder %v126, 2
    %v219 = vsel %vm218, %v217, 0.0
    %s220 = scalar_lea.vmem %s3, 128
    %v221 = vld [vmem:[%s220] sm:$0xff]
    %v222 = vld [vmem:[%s220 + $0x8] sm:$0xff]
    %v223 = vld [vmem:[%s220 + $0x10] sm:$0xff]
    %v224 = vld [vmem:[%s220 + $0x18] sm:$0xff]
    %v225 = vld [vmem:[%s220 + $0x20] sm:$0xff]
    %v226 = vld [vmem:[%s220 + $0x28] sm:$0xff]
    %v227 = vld [vmem:[%s220 + $0x30] sm:$0xff]
    %v228 = vld [vmem:[%s220 + $0x38] sm:$0xff]
    %v229 = vld [vmem:[%s220 + $0x40] sm:$0xff]
    %v230 = vld [vmem:[%s220 + $0x48] sm:$0xff]
    %v231 = vld [vmem:[%s220 + $0x50] sm:$0xff]
    %v232 = vld [vmem:[%s220 + $0x58] sm:$0xff]
    %v233 = vld [vmem:[%s220 + $0x60] sm:$0xff]
    %v234 = vld [vmem:[%s220 + $0x68] sm:$0xff]
    %v235 = vld [vmem:[%s220 + $0x70] sm:$0xff]
    %v236 = vld [vmem:[%s220 + $0x78] sm:$0xff]
    %237 = vmatprep.subr.mxu0 0.0
    %238 = vmatpush1.msra.mxu0 %v221
    %239 = vmatprep.subr.mxu0 0.0
    %240 = vmatpush1.msra.mxu0 %v222
    %241 = vmatprep.subr.mxu0 0.0
    %242 = vmatpush1.msra.mxu0 %v223
    %243 = vmatprep.subr.mxu0 0.0
    %244 = vmatpush1.msra.mxu0 %v224
    %245 = vmatprep.subr.mxu0 0.0
    %246 = vmatpush1.msra.mxu0 %v225
    %247 = vmatprep.subr.mxu0 0.0
    %248 = vmatpush1.msra.mxu0 %v226
    %249 = vmatprep.subr.mxu0 0.0
    %250 = vmatpush1.msra.mxu0 %v227
    %251 = vmatprep.subr.mxu0 0.0
    %252 = vmatpush1.msra.mxu0 %v228
    %253 = vmatprep.subr.mxu0 0.0
    %254 = vmatpush1.msra.mxu0 %v229
    %255 = vmatprep.subr.mxu0 0.0
    %256 = vmatpush1.msra.mxu0 %v230
    %257 = vmatprep.subr.mxu0 0.0
    %258 = vmatpush1.msra.mxu0 %v231
    %259 = vmatprep.subr.mxu0 0.0
    %260 = vmatpush1.msra.mxu0 %v232
    %261 = vmatprep.subr.mxu0 0.0
    %262 = vmatpush1.msra.mxu0 %v233
    %263 = vmatprep.subr.mxu0 0.0
    %264 = vmatpush1.msra.mxu0 %v234
    %265 = vmatprep.subr.mxu0 0.0
    %266 = vmatpush1.msra.mxu0 %v235
    %267 = vmatprep.subr.mxu0 0.0
    %268 = vmatpush1.msra.mxu0 %v236
    %269 = vmatprep.subr.mxu0 0.0
    %270 = vmatpush1.msra.mxu0 0.0
    %271 = vmatprep.subr.mxu0 0.0
    %272 = vmatpush1.msra.mxu0 0.0
    %273 = vmatprep.subr.mxu0 0.0
    %274 = vmatpush1.msra.mxu0 0.0
    %275 = vmatprep.subr.mxu0 0.0
    %276 = vmatpush1.msra.mxu0 0.0
    %277 = vmatprep.subr.mxu0 0.0
    %278 = vmatpush1.msra.mxu0 0.0
    %279 = vmatprep.subr.mxu0 0.0
    %280 = vmatpush1.msra.mxu0 0.0
    %281 = vmatprep.subr.mxu0 0.0
    %282 = vmatpush1.msra.mxu0 0.0
    %283 = vmatprep.subr.mxu0 0.0
    %284 = vmatpush1.msra.mxu0 0.0
    %285 = vmatprep.subr.mxu0 0.0
    %286 = vmatpush1.msra.mxu0 0.0
    %287 = vmatprep.subr.mxu0 0.0
    %288 = vmatpush1.msra.mxu0 0.0
    %289 = vmatprep.subr.mxu0 0.0
    %290 = vmatpush1.msra.mxu0 0.0
    %291 = vmatprep.subr.mxu0 0.0
    %292 = vmatpush1.msra.mxu0 0.0
    %293 = vmatprep.subr.mxu0 0.0
    %294 = vmatpush1.msra.mxu0 0.0
    %295 = vmatprep.subr.mxu0 0.0
    %296 = vmatpush1.msra.mxu0 0.0
    %297 = vmatprep.subr.mxu0 0.0
    %298 = vmatpush1.msra.mxu0 0.0
    %299 = vmatprep.subr.mxu0 0.0
    %300 = vmatpush1.msra.mxu0 0.0
    %301 = vmatprep.mubr.f32.mxu0 0.0
    %302 = vmatmul.mubr.f32.gmra.mrb[0].mxu0 %v219
    %v303 = vpop.f32.mrb[0].mxu0
    %v304 = vadd.f32 0.0, %v303
    %v305 = vpop.f32.mrb[0].mxu0
    %306 = vdwg.mxu0
    %v307 = vadd.f32 %v216, %v304
    %v308 = vrot.slane %v307, 4
    %vm309 = vcmp.ge.s32.totalorder %v126, 4
    %v310 = vsel %vm309, %v308, 0.0
    %s311 = scalar_lea.vmem %s3, 256
    %v312 = vld [vmem:[%s311] sm:$0xff]
    %v313 = vld [vmem:[%s311 + $0x8] sm:$0xff]
    %v314 = vld [vmem:[%s311 + $0x10] sm:$0xff]
    %v315 = vld [vmem:[%s311 + $0x18] sm:$0xff]
    %v316 = vld [vmem:[%s311 + $0x20] sm:$0xff]
    %v317 = vld [vmem:[%s311 + $0x28] sm:$0xff]
    %v318 = vld [vmem:[%s311 + $0x30] sm:$0xff]
    %v319 = vld [vmem:[%s311 + $0x38] sm:$0xff]
    %v320 = vld [vmem:[%s311 + $0x40] sm:$0xff]
    %v321 = vld [vmem:[%s311 + $0x48] sm:$0xff]
    %v322 = vld [vmem:[%s311 + $0x50] sm:$0xff]
    %v323 = vld [vmem:[%s311 + $0x58] sm:$0xff]
    %v324 = vld [vmem:[%s311 + $0x60] sm:$0xff]
    %v325 = vld [vmem:[%s311 + $0x68] sm:$0xff]
    %v326 = vld [vmem:[%s311 + $0x70] sm:$0xff]
    %v327 = vld [vmem:[%s311 + $0x78] sm:$0xff]
    %328 = vmatprep.subr.mxu0 0.0
    %329 = vmatpush1.msra.mxu0 %v312
    %330 = vmatprep.subr.mxu0 0.0
    %331 = vmatpush1.msra.mxu0 %v313
    %332 = vmatprep.subr.mxu0 0.0
    %333 = vmatpush1.msra.mxu0 %v314
    %334 = vmatprep.subr.mxu0 0.0
    %335 = vmatpush1.msra.mxu0 %v315
    %336 = vmatprep.subr.mxu0 0.0
    %337 = vmatpush1.msra.mxu0 %v316
    %338 = vmatprep.subr.mxu0 0.0
    %339 = vmatpush1.msra.mxu0 %v317
    %340 = vmatprep.subr.mxu0 0.0
    %341 = vmatpush1.msra.mxu0 %v318
    %342 = vmatprep.subr.mxu0 0.0
    %343 = vmatpush1.msra.mxu0 %v319
    %344 = vmatprep.subr.mxu0 0.0
    %345 = vmatpush1.msra.mxu0 %v320
    %346 = vmatprep.subr.mxu0 0.0
    %347 = vmatpush1.msra.mxu0 %v321
    %348 = vmatprep.subr.mxu0 0.0
    %349 = vmatpush1.msra.mxu0 %v322
    %350 = vmatprep.subr.mxu0 0.0
    %351 = vmatpush1.msra.mxu0 %v323
    %352 = vmatprep.subr.mxu0 0.0
    %353 = vmatpush1.msra.mxu0 %v324
    %354 = vmatprep.subr.mxu0 0.0
    %355 = vmatpush1.msra.mxu0 %v325
    %356 = vmatprep.subr.mxu0 0.0
    %357 = vmatpush1.msra.mxu0 %v326
    %358 = vmatprep.subr.mxu0 0.0
    %359 = vmatpush1.msra.mxu0 %v327
    %360 = vmatprep.subr.mxu0 0.0
    %361 = vmatpush1.msra.mxu0 0.0
    %362 = vmatprep.subr.mxu0 0.0
    %363 = vmatpush1.msra.mxu0 0.0
    %364 = vmatprep.subr.mxu0 0.0
    %365 = vmatpush1.msra.mxu0 0.0
    %366 = vmatprep.subr.mxu0 0.0
    %367 = vmatpush1.msra.mxu0 0.0
    %368 = vmatprep.subr.mxu0 0.0
    %369 = vmatpush1.msra.mxu0 0.0
    %370 = vmatprep.subr.mxu0 0.0
    %371 = vmatpush1.msra.mxu0 0.0
    %372 = vmatprep.subr.mxu0 0.0
    %373 = vmatpush1.msra.mxu0 0.0
    %374 = vmatprep.subr.mxu0 0.0
    %375 = vmatpush1.msra.mxu0 0.0
    %376 = vmatprep.subr.mxu0 0.0
    %377 = vmatpush1.msra.mxu0 0.0
    %378 = vmatprep.subr.mxu0 0.0
    %379 = vmatpush1.msra.mxu0 0.0
    %380 = vmatprep.subr.mxu0 0.0
    %381 = vmatpush1.msra.mxu0 0.0
    %382 = vmatprep.subr.mxu0 0.0
    %383 = vmatpush1.msra.mxu0 0.0
    %384 = vmatprep.subr.mxu0 0.0
    %385 = vmatpush1.msra.mxu0 0.0
    %386 = vmatprep.subr.mxu0 0.0
    %387 = vmatpush1.msra.mxu0 0.0
    %388 = vmatprep.subr.mxu0 0.0
    %389 = vmatpush1.msra.mxu0 0.0
    %390 = vmatprep.subr.mxu0 0.0
    %391 = vmatpush1.msra.mxu0 0.0
    %392 = vmatprep.mubr.f32.mxu0 0.0
    %393 = vmatmul.mubr.f32.gmra.mrb[0].mxu0 %v310
    %v394 = vpop.f32.mrb[0].mxu0
    %v395 = vadd.f32 0.0, %v394
    %v396 = vpop.f32.mrb[0].mxu0
    %397 = vdwg.mxu0
    %v398 = vadd.f32 %v307, %v395
    %v399 = vrot.slane %v398, 7
    %v400 = vsel %vm128, %v399, 0.0
    %v401 = vld [vmem:[%s2] sm:$0xff]
    %v402 = vld [vmem:[%s2 + $0x8] sm:$0xff]
    %v403 = vld [vmem:[%s2 + $0x10] sm:$0xff]
    %v404 = vld [vmem:[%s2 + $0x18] sm:$0xff]
    %v405 = vld [vmem:[%s2 + $0x20] sm:$0xff]
    %v406 = vld [vmem:[%s2 + $0x28] sm:$0xff]
    %v407 = vld [vmem:[%s2 + $0x30] sm:$0xff]
    %v408 = vld [vmem:[%s2 + $0x38] sm:$0xff]
    %v409 = vld [vmem:[%s2 + $0x40] sm:$0xff]
    %v410 = vld [vmem:[%s2 + $0x48] sm:$0xff]
    %v411 = vld [vmem:[%s2 + $0x50] sm:$0xff]
    %v412 = vld [vmem:[%s2 + $0x58] sm:$0xff]
    %v413 = vld [vmem:[%s2 + $0x60] sm:$0xff]
    %v414 = vld [vmem:[%s2 + $0x68] sm:$0xff]
    %v415 = vld [vmem:[%s2 + $0x70] sm:$0xff]
    %v416 = vld [vmem:[%s2 + $0x78] sm:$0xff]
    %417 = vmatprep.subr.mxu0 0.0
    %418 = vmatpush1.msra.mxu0 %v401
    %419 = vmatprep.subr.mxu0 0.0
    %420 = vmatpush1.msra.mxu0 %v402
    %421 = vmatprep.subr.mxu0 0.0
    %422 = vmatpush1.msra.mxu0 %v403
    %423 = vmatprep.subr.mxu0 0.0
    %424 = vmatpush1.msra.mxu0 %v404
    %425 = vmatprep.subr.mxu0 0.0
    %426 = vmatpush1.msra.mxu0 %v405
    %427 = vmatprep.subr.mxu0 0.0
    %428 = vmatpush1.msra.mxu0 %v406
    %429 = vmatprep.subr.mxu0 0.0
    %430 = vmatpush1.msra.mxu0 %v407
    %431 = vmatprep.subr.mxu0 0.0
    %432 = vmatpush1.msra.mxu0 %v408
    %433 = vmatprep.subr.mxu0 0.0
    %434 = vmatpush1.msra.mxu0 %v409
    %435 = vmatprep.subr.mxu0 0.0
    %436 = vmatpush1.msra.mxu0 %v410
    %437 = vmatprep.subr.mxu0 0.0
    %438 = vmatpush1.msra.mxu0 %v411
    %439 = vmatprep.subr.mxu0 0.0
    %440 = vmatpush1.msra.mxu0 %v412
    %441 = vmatprep.subr.mxu0 0.0
    %442 = vmatpush1.msra.mxu0 %v413
    %443 = vmatprep.subr.mxu0 0.0
    %444 = vmatpush1.msra.mxu0 %v414
    %445 = vmatprep.subr.mxu0 0.0
    %446 = vmatpush1.msra.mxu0 %v415
    %447 = vmatprep.subr.mxu0 0.0
    %448 = vmatpush1.msra.mxu0 %v416
    %449 = vmatprep.subr.mxu0 0.0
    %450 = vmatpush1.msra.mxu0 0.0
    %451 = vmatprep.subr.mxu0 0.0
    %452 = vmatpush1.msra.mxu0 0.0
    %453 = vmatprep.subr.mxu0 0.0
    %454 = vmatpush1.msra.mxu0 0.0
    %455 = vmatprep.subr.mxu0 0.0
    %456 = vmatpush1.msra.mxu0 0.0
    %457 = vmatprep.subr.mxu0 0.0
    %458 = vmatpush1.msra.mxu0 0.0
    %459 = vmatprep.subr.mxu0 0.0
    %460 = vmatpush1.msra.mxu0 0.0
    %461 = vmatprep.subr.mxu0 0.0
    %462 = vmatpush1.msra.mxu0 0.0
    %463 = vmatprep.subr.mxu0 0.0
    %464 = vmatpush1.msra.mxu0 0.0
    %465 = vmatprep.subr.mxu0 0.0
    %466 = vmatpush1.msra.mxu0 0.0
    %467 = vmatprep.subr.mxu0 0.0
    %468 = vmatpush1.msra.mxu0 0.0
    %469 = vmatprep.subr.mxu0 0.0
    %470 = vmatpush1.msra.mxu0 0.0
    %471 = vmatprep.subr.mxu0 0.0
    %472 = vmatpush1.msra.mxu0 0.0
    %473 = vmatprep.subr.mxu0 0.0
    %474 = vmatpush1.msra.mxu0 0.0
    %475 = vmatprep.subr.mxu0 0.0
    %476 = vmatpush1.msra.mxu0 0.0
    %477 = vmatprep.subr.mxu0 0.0
    %478 = vmatpush1.msra.mxu0 0.0
    %479 = vmatprep.subr.mxu0 0.0
    %480 = vmatpush1.msra.mxu0 0.0
    %481 = vmatprep.mubr.f32.mxu0 0.0
    %482 = vmatmul.mubr.f32.gmra.mrb[0].mxu0 %v400
    %v483 = vpop.f32.mrb[0].mxu0
    %v484 = vadd.f32 0.0, %v483
    %v485 = vpop.f32.mrb[0].mxu0
    %486 = vdwg.mxu0
    %v487 = vadd.f32 %v121, %v484
    %v488 = vld [vmem:[%s4] sm:$0xff]
    %v489 = vadd.f32 %v487, %v488
    %490 = vst [vmem:[#allocation2] sm:$0xff] %v489
    // Predicated region
    $region22: #{time_domain_model_forward.1} parent=1 // pred_check
      _
    $region23: #{time_domain_model_forward.1} parent=1 // pred_check_branch
      %492 = sbr.rel (0) target = $region25
    $region24: #{time_domain_model_forward.1} parent=1 // pred_region
      %s494 = ssub.s32 128, 128
      %495 = vsyncadd [#allocation3], %s494
      %s497 = sshll.u32 [#allocation2], 4
      %s498 = int_to_ptr.vmem [resolvable:$true] %s497
      %500 = dma.vmem_to_hbm [thread:$0]  %s498, 128, %s5, [#allocation3]
    $region25: #{time_domain_model_forward.1} parent=1 // pred_fallthru
      _
    // Predicated region
    $region26: #{time_domain_model_forward.1} parent=1 // pred_check
      _
    $region27: #{time_domain_model_forward.1} parent=1 // pred_check_branch
      %502 = sbr.rel (0) target = $region29
    $region28: #{time_domain_model_forward.1} parent=1 // pred_region
      %503 = dma.done [#allocation3], 128
    $region29: #{time_domain_model_forward.1} parent=1 // pred_fallthru
      _
    %504 = vsyncpa [#allocation3], 1

</llo_original>
